<compile_context>
chip_gen: v6e
topology: v6e:2x2x1
jax: 0.10.0
libtpu: 0.0.40
codegen_flags: <defaults>
</compile_context>

<pallas_src>
import math
import functools

import jax
import jax.numpy as jnp
from jax.experimental import pallas as pl
from jax.experimental.pallas import tpu as pltpu


def _build_pe_table(d_model: int, max_len: int) -> jnp.ndarray:
    """Precompute the sinusoidal table exactly as the PyTorch __init__ does."""
    position = jnp.arange(0, max_len, dtype=jnp.float32)[:, None]            # (L, 1)
    div_term = jnp.exp(
        jnp.arange(0, d_model, 2, dtype=jnp.float32) * (-math.log(10000.0) / d_model)
    )                                                                         # (D/2,)
    pe = jnp.zeros((max_len, d_model), dtype=jnp.float32)
    pe = pe.at[:, 0::2].set(jnp.sin(position * div_term))
    pe = pe.at[:, 1::2].set(jnp.cos(position * div_term))
    return pe                                                                 # (L, D)


def _pe_add_kernel(x_ref, pe_ref, o_ref):
    # x_ref: (B, tile), pe_ref: (1, tile) -> broadcast add over batch rows.
    o_ref[...] = (x_ref[...] + pe_ref[...]).astype(o_ref.dtype)


def _pe_add_dropout_kernel(x_ref, pe_ref, m_ref, o_ref):
    # m_ref already holds keep/(1-p): fused inverted dropout.
    o_ref[...] = ((x_ref[...] + pe_ref[...]) * m_ref[...]).astype(o_ref.dtype)


def _pick_tile(n: int, b: int, dtype_bytes: int, target_bytes: int = 1 << 20) -> int:
    """Largest lane-dense (multiple-of-128) divisor of n whose (b, tile) block
    stays under target_bytes; falls back to the smallest such divisor, then n
    (a full-extent last dim is always a legal block shape)."""
    div128 = [t for t in range(128, n + 1, 128) if n % t == 0]
    fitting = [t for t in div128 if b * t * dtype_bytes <= target_bytes]
    if fitting:
        return max(fitting)
    if div128:
        return min(div128)
    return n


@functools.partial(jax.jit, static_argnames=("p_dropout", "train"))
def positional_encoding(x, pe, key=None, *, p_dropout=0.1, train=False):
    """x: (B, S, D); pe: (max_len, D) f32; key: jax PRNG key (train mode only)."""
    B, S, D = x.shape
    N = S * D

    # Slice to the used rows and flatten to a lane-dense 2-D layout.
    pe2 = pe[:S].reshape(1, N)
    x2 = x.reshape(B, N)

    tile = _pick_tile(N, B, x.dtype.itemsize)
    grid = (N // tile,)

    x_spec = pl.BlockSpec((B, tile), lambda n: (0, n))
    pe_spec = pl.BlockSpec((1, tile), lambda n: (0, n))
    out_spec = pl.BlockSpec((B, tile), lambda n: (0, n))
    out_shape = jax.ShapeDtypeStruct((B, N), x.dtype)
    cparams = pltpu.CompilerParams(dimension_semantics=("parallel",))

    use_dropout = train and p_dropout > 0.0
    if use_dropout:
        assert p_dropout < 1.0, "p_dropout == 1.0 is degenerate (all outputs zero)"
        assert key is not None, "train-mode dropout requires a PRNG key"
        keep = jax.random.bernoulli(key, p=1.0 - p_dropout, shape=(B, N))
        # Pre-scaled keep mask in f32 so the add+dropout math happens in f32.
        mask = keep.astype(jnp.float32) * jnp.float32(1.0 / (1.0 - p_dropout))
        out2 = pl.pallas_call(
            _pe_add_dropout_kernel,
            out_shape=out_shape,
            grid=grid,
            in_specs=[x_spec, pe_spec, pl.BlockSpec((B, tile), lambda n: (0, n))],
            out_specs=out_spec,
            compiler_params=cparams,
        )(x2, pe2, mask)
    else:
        out2 = pl.pallas_call(
            _pe_add_kernel,
            out_shape=out_shape,
            grid=grid,
            in_specs=[x_spec, pe_spec],
            out_specs=out_spec,
            compiler_params=cparams,
        )(x2, pe2)

    return out2.reshape(B, S, D)


if __name__ == "__main__":
    B, S, D = 2, 8, 32
    MAX_LEN = 64                     # small stand-in for max_len=5000
    P_DROPOUT = 0.1

    key = jax.random.PRNGKey(0)
    kx, kd = jax.random.split(key)
    x = jax.random.normal(kx, (B, S, D), dtype=jnp.float32)
    pe = _build_pe_table(D, MAX_LEN)

    # Eval mode (dropout = identity): exact match with x + pe[:S].
    out_eval = positional_encoding(x, pe, p_dropout=P_DROPOUT, train=False)
    jax.block_until_ready(out_eval)
    ref = x + pe[:S][None, :, :]
    assert jnp.allclose(out_eval, ref, atol=1e-6), "eval-mode mismatch"

    # Train mode: fused inverted dropout (mask generated with jax.random).
    out_train = positional_encoding(x, pe, kd, p_dropout=P_DROPOUT, train=True)
    jax.block_until_ready(out_train)
    assert out_train.shape == (B, S, D)
    scaled = ref / (1.0 - P_DROPOUT)
    ok = jnp.all((out_train == 0.0) | (jnp.abs(out_train - scaled) < 1e-5))
    assert bool(ok), "train-mode dropout semantics mismatch"

    print("KERNEL_OK")
</pallas_src>

<mosaic_0001>
module attributes {stable_mosaic.version = 11 : i64} {
  func.func @_pe_add_kernel(%arg0: i32, %arg1: memref<2x256xf32, #tpu.memory_space<vmem>>, %arg2: memref<1x256xf32, #tpu.memory_space<vmem>>, %arg3: memref<2x256xf32, #tpu.memory_space<vmem>>) attributes {dimension_semantics = [#tpu.dimension_semantics<parallel>], iteration_bounds = array<i64: 1>, scalar_prefetch = 0 : i64, scratch_operands = 0 : i64, tpu.core_type = #tpu.core_type<tc>, window_params = [{transform_indices = @transform_0, window_bounds = array<i64: 2, 256>}, {transform_indices = @transform_1, window_bounds = array<i64: 1, 256>}, {transform_indices = @transform_2, window_bounds = array<i64: 2, 256>}]} {
    %c0 = arith.constant 0 : index
    %c0_0 = arith.constant 0 : index
    %0 = vector.load %arg1[%c0, %c0_0] : memref<2x256xf32, #tpu.memory_space<vmem>>, vector<2x256xf32>
    %c0_1 = arith.constant 0 : index
    %c0_2 = arith.constant 0 : index
    %1 = vector.load %arg2[%c0_1, %c0_2] : memref<1x256xf32, #tpu.memory_space<vmem>>, vector<1x256xf32>
    %2 = vector.broadcast %1 : vector<1x256xf32> to vector<2x256xf32>
    %3 = arith.addf %0, %2 : vector<2x256xf32>
    %c0_3 = arith.constant 0 : index
    %c0_4 = arith.constant 0 : index
    %4 = vector.load %arg3[%c0_3, %c0_4] : memref<2x256xf32, #tpu.memory_space<vmem>>, vector<2x256xf32>
    tpu.vector_store %arg3[%c0_3, %c0_4], %3 {strides = array<i32>} : memref<2x256xf32, #tpu.memory_space<vmem>>, vector<2x256xf32>,
    return
  }
  func.func @transform_0(%arg0: i32) -> (i32, i32) {
    %c0_i32 = arith.constant 0 : i32
    %c0_i32_0 = arith.constant 0 : i32
    return %c0_i32, %arg0 : i32, i32
  }
  func.func @transform_1(%arg0: i32) -> (i32, i32) {
    %c0_i32 = arith.constant 0 : i32
    %c0_i32_0 = arith.constant 0 : i32
    return %c0_i32, %arg0 : i32, i32
  }
  func.func @transform_2(%arg0: i32) -> (i32, i32) {
    %c0_i32 = arith.constant 0 : i32
    %c0_i32_0 = arith.constant 0 : i32
    return %c0_i32, %arg0 : i32, i32
  }
}

</mosaic_0001>

<llo_original>
// kernel: positional_encoding.1
$region0: #{positional_encoding.1}
  #allocation0 [shape = 'u32[]', space=smem, size = 0x4, offset = 0x4, fixed_abs, tag = 'smem constant byte address 0x4 - core index']
  #allocation1 [shape = 'u32[144,128]{1,0:T(1,128)}', space=vmem, size = 0x12000, scoped, tag = 'internal scratch']
  %s0 = inlined_call_operand.vmem [shape: f32[2,256], index: 0, kind: input, shape index: {}]
  %s1 = inlined_call_operand.vmem [shape: f32[1,256], index: 1, kind: input, shape index: {}]
  %s2 = inlined_call_operand.vmem [shape: f32[2,256], index: 2, kind: output, shape index: {}]
  %s3 = sld [smem:[#allocation0]]
  $region18: #{positional_encoding.1} parent=0
    _
  %s5 = ssub.s32 1, %s3
  %s6 = scalar_select 0, %s5, %s3
  // Predicated region
  $region2: #{positional_encoding.1} parent=0 // pred_check
    _
  $region3: #{positional_encoding.1} parent=0 // pred_check_branch
    %8 = sbr.rel (0) target = $region5
  $region4: #{positional_encoding.1} parent=0 // pred_region
    _
  $region5: #{positional_encoding.1} parent=0 // pred_fallthru
    _
  // Predicated region
  $region6: #{positional_encoding.1} parent=0 // pred_check
    _
  $region7: #{positional_encoding.1} parent=0 // pred_check_branch
    %10 = sbr.rel (0) target = $region9
  $region8: #{positional_encoding.1} parent=0 // pred_region
    _
  $region9: #{positional_encoding.1} parent=0 // pred_fallthru
    _
  %v11 = vld [vmem:[%s0] sm:$0xf]
  %v12 = vld [vmem:[%s1] sm:$0x3]
  %v14 = vlaneseq
  %v15 = vshrl.u32 %v14, 7
  %v16 = vsub.s32 0, %v15
  %v17 = vrot.slane %v12, %v16
  %v18 = vlaneseq
  %v19 = vshrl.u32 %v18, 7
  %v20 = vsub.s32 1, %v19
  %v21 = vrot.slane %v12, %v20
  %v22 = vcombine.low %v17, %v21
  %v24 = vunpack.c.l.s4 1983009808
  %v25 = vunpack.c.0.s8 %v24
  %v26 = vlaneseq
  %v27 = vshrl.u32 %v26, 7
  %v28 = vsub.s32 %v25, %v27
  %v29 = vrot.slane %v22, %v28
  %v31 = vadd.f32 %v11, %v29
  %32 = vst [vmem:[%s2] sm:$0xf] %v31
  // Predicated region
  $region10: #{positional_encoding.1} parent=0 // pred_check
    _
  $region11: #{positional_encoding.1} parent=0 // pred_check_branch
    %34 = sbr.rel (0) target = $region13
  $region12: #{positional_encoding.1} parent=0 // pred_region
    _
  $region13: #{positional_encoding.1} parent=0 // pred_fallthru
    _
  // Predicated region
  $region14: #{positional_encoding.1} parent=0 // pred_check
    _
  $region15: #{positional_encoding.1} parent=0 // pred_check_branch
    %36 = sbr.rel (0) target = $region17
  $region16: #{positional_encoding.1} parent=0 // pred_region
    _
  $region17: #{positional_encoding.1} parent=0 // pred_fallthru
    _

</llo_original>
